<compile_context>
chip_gen: v7x
topology: tpu7x:2x2x1
jax: 0.10.0
libtpu: 0.0.40
codegen_flags: <defaults>
</compile_context>

<pallas_src>
import math

import jax
import jax.numpy as jnp
from jax.experimental import pallas as pl
from jax.experimental.pallas import tpu as pltpu


def lstm_cell_kernel(xh_ref, c_ref, w_ref, b_ref, gates_ref, hc_ref):
    """One LSTM cell step.

    xh_ref:    (B, D+H)   concatenated [x_t | h_{t-1}]
    c_ref:     (B, H)     previous cell state
    w_ref:     (D+H, 4H)  fused, pre-transposed weights [Wi^T ; Wh^T]
    b_ref:     (1, 4H)    folded bias (b_i2h + b_h2h)
    gates_ref: (B, 4H)    activated gates [f | i | o | g]   (lane-dense slab)
    hc_ref:    (B, 2H)    [h_t | c_t]                       (lane-dense slab)
    """
    H = c_ref.shape[1]

    # Single fused matmul on the MXU, f32 accumulation, bias folded in.
    preact = jnp.dot(xh_ref[...], w_ref[...],
                     preferred_element_type=jnp.float32) + b_ref[...]

    # Apply the nonlinearity on the full (B, 4H) vreg with a lane mask:
    # sigmoid for the first 3H lanes (f, i, o), tanh for the last H lanes (g).
    lane = jax.lax.broadcasted_iota(jnp.int32, preact.shape, 1)
    act = jnp.where(lane < 3 * H, jax.nn.sigmoid(preact), jnp.tanh(preact))
    gates_ref[...] = act

    # Cell update.  The per-gate views below are inherent to the recurrence
    # (they map to XLU lane shuffles, which sit in a non-critical slot).
    f_t = act[:, 0:H]
    i_t = act[:, H:2 * H]
    o_t = act[:, 2 * H:3 * H]
    g_t = act[:, 3 * H:4 * H]

    c_t = c_ref[...] * f_t + i_t * g_t
    h_t = o_t * jnp.tanh(c_t)

    # One combined lane-dense store instead of two narrow ones.
    hc_ref[...] = jnp.concatenate([h_t, c_t], axis=-1)


def lstm_forward(x_t, h, c, w_i2h, b_i2h, w_h2h, b_h2h):
    """Mirrors LSTM.forward: returns (output_t, h_t, c_t, [f_t, i_t, o_t])."""
    B = x_t.shape[1]
    H = h.shape[-1]

    # Flatten the (1, B, F) tensors exactly like the PyTorch .view calls.
    x2 = x_t.reshape(B, -1).astype(jnp.float32)
    h2 = h.reshape(B, -1).astype(jnp.float32)
    c2 = c.reshape(B, -1).astype(jnp.float32)

    # Fuse inputs and weights:  preact = [x | h] @ [Wi^T ; Wh^T] + (b_i + b_h)
    xh = jnp.concatenate([x2, h2], axis=-1)                            # (B, D+H)
    w_fused = jnp.concatenate([w_i2h, w_h2h], axis=1).T.astype(jnp.float32)  # (D+H, 4H)
    bias = (b_i2h + b_h2h).reshape(1, -1).astype(jnp.float32)          # (1, 4H)

    vmem = pl.BlockSpec(memory_space=pltpu.MemorySpace.VMEM)

    gates, hc = pl.pallas_call(
        lstm_cell_kernel,
        out_shape=(
            jax.ShapeDtypeStruct((B, 4 * H), jnp.float32),  # [f | i | o | g]
            jax.ShapeDtypeStruct((B, 2 * H), jnp.float32),  # [h_t | c_t]
        ),
        in_specs=[vmem, vmem, vmem, vmem],
        out_specs=(vmem, vmem),
    )(xh, c2, w_fused, bias)

    h_t = hc[:, :H]
    c_t = hc[:, H:]
    f_t = gates[:, :H]
    i_t = gates[:, H:2 * H]
    o_t = gates[:, 2 * H:3 * H]

    output_t = h_t.reshape(1, B, H)
    h_t3 = h_t.reshape(1, B, H)
    c_t3 = c_t.reshape(1, B, H)
    cache = [f_t, i_t, o_t]
    return output_t, h_t3, c_t3, cache


def xavier_uniform(key, shape):
    # PyTorch xavier_uniform_ on a Linear weight (out, in): fan_in=in, fan_out=out.
    fan_out, fan_in = shape
    bound = math.sqrt(6.0 / (fan_in + fan_out))
    return jax.random.uniform(key, shape, jnp.float32, -bound, bound)


def lstm_ref(x_t, h, c, w_i2h, b_i2h, w_h2h, b_h2h, hidden_dim):
    """Pure-JAX reference matching the PyTorch forward."""
    B = x_t.shape[1]
    x2 = x_t.reshape(B, -1)
    h2 = h.reshape(B, -1)
    c2 = c.reshape(B, -1)
    preact = x2 @ w_i2h.T + b_i2h + h2 @ w_h2h.T + b_h2h
    gates = jax.nn.sigmoid(preact[:, :3 * hidden_dim])
    f_t = gates[:, :hidden_dim]
    i_t = gates[:, hidden_dim:2 * hidden_dim]
    o_t = gates[:, -hidden_dim:]
    c_new = jnp.tanh(preact[:, 3 * hidden_dim:])
    c_t = c2 * f_t + i_t * c_new
    h_t = o_t * jnp.tanh(c_t)
    return h_t.reshape(1, B, -1), c_t.reshape(1, B, -1), (f_t, i_t, o_t)


if __name__ == "__main__":
    B = 8
    input_dim = 32
    hidden_dim = 32

    key = jax.random.PRNGKey(0)
    k_x, k_h, k_c, k_wi, k_wh = jax.random.split(key, 5)

    x_t = jax.random.normal(k_x, (1, B, input_dim), jnp.float32)
    h0 = jax.random.normal(k_h, (1, B, hidden_dim), jnp.float32)
    c0 = jax.random.normal(k_c, (1, B, hidden_dim), jnp.float32)

    # Parameters (deterministic, mirroring reset_parameters): xavier_uniform
    # for 2-D weights, zeros for biases.
    w_i2h = xavier_uniform(k_wi, (4 * hidden_dim, input_dim))
    w_h2h = xavier_uniform(k_wh, (4 * hidden_dim, hidden_dim))
    b_i2h = jnp.zeros((4 * hidden_dim,), jnp.float32)
    b_h2h = jnp.zeros((4 * hidden_dim,), jnp.float32)

    output_t, h_t, c_t, cache = lstm_forward(
        x_t, h0, c0, w_i2h, b_i2h, w_h2h, b_h2h)
    jax.block_until_ready((output_t, h_t, c_t, cache))

    # Correctness check against a pure-JAX reference of the PyTorch forward.
    h_ref, c_ref, (f_ref, i_ref, o_ref) = lstm_ref(
        x_t, h0, c0, w_i2h, b_i2h, w_h2h, b_h2h, hidden_dim)
    assert jnp.allclose(h_t, h_ref, atol=1e-5, rtol=1e-5)
    assert jnp.allclose(output_t, h_ref, atol=1e-5, rtol=1e-5)
    assert jnp.allclose(c_t, c_ref, atol=1e-5, rtol=1e-5)
    assert jnp.allclose(cache[0], f_ref, atol=1e-5, rtol=1e-5)
    assert jnp.allclose(cache[1], i_ref, atol=1e-5, rtol=1e-5)
    assert jnp.allclose(cache[2], o_ref, atol=1e-5, rtol=1e-5)

    print("KERNEL_OK")
</pallas_src>

<mosaic_0001>
module attributes {stable_mosaic.version = 11 : i64} {
  func.func @lstm_cell_kernel(%arg0: memref<8x64xf32, #tpu.memory_space<vmem>>, %arg1: memref<8x32xf32, #tpu.memory_space<vmem>>, %arg2: memref<64x128xf32, #tpu.memory_space<vmem>>, %arg3: memref<1x128xf32, #tpu.memory_space<vmem>>, %arg4: memref<8x128xf32, #tpu.memory_space<vmem>>, %arg5: memref<8x64xf32, #tpu.memory_space<vmem>>) attributes {dimension_semantics = [], scalar_prefetch = 0 : i64, scratch_operands = 0 : i64, tpu.core_type = #tpu.core_type<tc>} {
    %c0 = arith.constant 0 : index
    %c0_0 = arith.constant 0 : index
    %0 = vector.load %arg0[%c0, %c0_0] : memref<8x64xf32, #tpu.memory_space<vmem>>, vector<8x64xf32>
    %c0_1 = arith.constant 0 : index
    %c0_2 = arith.constant 0 : index
    %1 = vector.load %arg2[%c0_1, %c0_2] : memref<64x128xf32, #tpu.memory_space<vmem>>, vector<64x128xf32>
    %cst = arith.constant dense<0.000000e+00> : vector<8x128xf32>
    %2 = tpu.matmul %0, %1, %cst {dimension_numbers = #tpu.dot_dimension_numbers<[1], [0], [0], [1], [0, 0, 1, 1], [], []>} : vector<8x64xf32>, vector<64x128xf32>, vector<8x128xf32> -> vector<8x128xf32>
    %c0_3 = arith.constant 0 : index
    %c0_4 = arith.constant 0 : index
    %3 = vector.load %arg3[%c0_3, %c0_4] : memref<1x128xf32, #tpu.memory_space<vmem>>, vector<1x128xf32>
    %4 = vector.broadcast %3 : vector<1x128xf32> to vector<8x128xf32>
    %5 = arith.addf %2, %4 : vector<8x128xf32>
    %6 = tpu.iota {dimensions = array<i32: 1>} : vector<8x128xi32>
    %c96_i32 = arith.constant 96 : i32
    %7 = vector.broadcast %c96_i32 : i32 to vector<8x128xi32>
    %8 = arith.cmpi slt, %6, %7 : vector<8x128xi32>
    %9 = arith.negf %5 : vector<8x128xf32>
    %10 = math.exp %9 : vector<8x128xf32>
    %cst_5 = arith.constant 1.000000e+00 : f32
    %11 = vector.broadcast %cst_5 : f32 to vector<8x128xf32>
    %12 = arith.addf %11, %10 : vector<8x128xf32>
    %13 = arith.divf %11, %12 : vector<8x128xf32>
    %14 = math.tanh %5 : vector<8x128xf32>
    %15 = arith.select %8, %13, %14 : vector<8x128xi1>, vector<8x128xf32>
    %c0_6 = arith.constant 0 : index
    %c0_7 = arith.constant 0 : index
    %16 = vector.load %arg4[%c0_6, %c0_7] : memref<8x128xf32, #tpu.memory_space<vmem>>, vector<8x128xf32>
    tpu.vector_store %arg4[%c0_6, %c0_7], %15 {strides = array<i32>} : memref<8x128xf32, #tpu.memory_space<vmem>>, vector<8x128xf32>,
    %17 = vector.extract_strided_slice %15 {offsets = [0, 0], sizes = [8, 32], strides = [1, 1]} : vector<8x128xf32> to vector<8x32xf32>
    %18 = vector.extract_strided_slice %15 {offsets = [0, 32], sizes = [8, 32], strides = [1, 1]} : vector<8x128xf32> to vector<8x32xf32>
    %19 = vector.extract_strided_slice %15 {offsets = [0, 64], sizes = [8, 32], strides = [1, 1]} : vector<8x128xf32> to vector<8x32xf32>
    %20 = vector.extract_strided_slice %15 {offsets = [0, 96], sizes = [8, 32], strides = [1, 1]} : vector<8x128xf32> to vector<8x32xf32>
    %c0_8 = arith.constant 0 : index
    %c0_9 = arith.constant 0 : index
    %21 = vector.load %arg1[%c0_8, %c0_9] : memref<8x32xf32, #tpu.memory_space<vmem>>, vector<8x32xf32>
    %22 = arith.mulf %21, %17 : vector<8x32xf32>
    %23 = arith.mulf %18, %20 : vector<8x32xf32>
    %24 = arith.addf %22, %23 : vector<8x32xf32>
    %25 = math.tanh %24 : vector<8x32xf32>
    %26 = arith.mulf %19, %25 : vector<8x32xf32>
    %27 = tpu.concatenate %26, %24 in 1 : vector<8x32xf32>, vector<8x32xf32> -> vector<8x64xf32>
    %c0_10 = arith.constant 0 : index
    %c0_11 = arith.constant 0 : index
    %28 = vector.load %arg5[%c0_10, %c0_11] : memref<8x64xf32, #tpu.memory_space<vmem>>, vector<8x64xf32>
    tpu.vector_store %arg5[%c0_10, %c0_11], %27 {strides = array<i32>} : memref<8x64xf32, #tpu.memory_space<vmem>>, vector<8x64xf32>,
    return
  }
}

</mosaic_0001>

<llo_original>
// kernel: tpu_custom_call.1
$region0: #{tpu_custom_call.1}
  #allocation0 [shape = 'u32[]', space=smem, size = 0x4, offset = 0x4, fixed_abs, tag = 'smem constant byte address 0x4 - core index']
  #allocation1 [shape = 'u32[144,128]{1,0:T(1,128)}', space=vmem, size = 0x12000, scoped, tag = 'internal scratch']
  %s0 = inlined_call_operand.hbm [shape: f32[8,64], index: 0, kind: input, shape index: {}]
  %s1 = inlined_call_operand.hbm [shape: f32[8,32], index: 1, kind: input, shape index: {}]
  %s2 = inlined_call_operand.hbm [shape: f32[64,128], index: 2, kind: input, shape index: {}]
  %s3 = inlined_call_operand.vmem [shape: f32[1,128], index: 3, kind: input, shape index: {}]
  %s4 = inlined_call_operand.hbm [shape: f32[8,128], index: 4, kind: output, shape index: {0}]
  %s5 = inlined_call_operand.hbm [shape: f32[8,64], index: 5, kind: output, shape index: {1}]
  %6 = xla_tuple %s4, %s5
  %s7 = sld [smem:[#allocation0]]
  $region46: #{tpu_custom_call.1} parent=0
    _
  %s9 = ssub.s32 1, %s7
  %s10 = scalar_select 0, %s9, %s7
  $region1: #{tpu_custom_call.1} parent=0
    #allocation2 [shape = 'u8[4096]{0}', space=vmem, size = 0x1000, scoped, tag = 'input window, operand 0, single buffered']
    #allocation3 [shape = 's32[1]{0}', space=sflag, size = 0x4, scoped, tag = 'scoped memory for tpu_custom_call.1']
    #allocation4 [shape = 's32[1]{0}', space=sflag, size = 0x4, scoped, tag = 'scoped memory for tpu_custom_call.1']
    #allocation5 [shape = 'u8[4096]{0}', space=vmem, size = 0x1000, scoped, tag = 'input window, operand 1, single buffered']
    #allocation6 [shape = 's32[1]{0}', space=sflag, size = 0x4, scoped, tag = 'scoped memory for tpu_custom_call.1']
    #allocation7 [shape = 'u8[32768]{0}', space=vmem, size = 0x8000, scoped, tag = 'input window, operand 2, single buffered']
    #allocation8 [shape = 'u8[4096]{0}', space=vmem, size = 0x1000, scoped, tag = 'output window, operand 0, single buffered']
    #allocation9 [shape = 'u8[4096]{0}', space=vmem, size = 0x1000, scoped, tag = 'output window, operand 1, single buffered']
    #allocation10 [shape = 's32[1]{0}', space=sflag, size = 0x4, scoped, tag = 'scoped memory for tpu_custom_call.1']
    %11 = vsyncpa [#allocation3], 0
    %12 = vsyncpa [#allocation6], 0
    %13 = vsyncpa [#allocation4], 0
    %14 = vsyncpa [#allocation10], 0
    // Predicated region
    $region2: #{tpu_custom_call.1} parent=1 // pred_check
      _
    $region3: #{tpu_custom_call.1} parent=1 // pred_check_branch
      %16 = sbr.rel (0) target = $region5
    $region4: #{tpu_custom_call.1} parent=1 // pred_region
      %s18 = ssub.s32 128, 128
      %19 = vsyncadd [#allocation3], %s18
      %s21 = sshll.u32 [#allocation2], 4
      %s22 = int_to_ptr.vmem [resolvable:$true] %s21
      %24 = dma.hbm_to_vmem [thread:$0]  %s0, 128, %s22, [#allocation3]
    $region5: #{tpu_custom_call.1} parent=1 // pred_fallthru
      _
    // Predicated region
    $region6: #{tpu_custom_call.1} parent=1 // pred_check
      _
    $region7: #{tpu_custom_call.1} parent=1 // pred_check_branch
      %26 = sbr.rel (0) target = $region9
    $region8: #{tpu_custom_call.1} parent=1 // pred_region
      %s28 = ssub.s32 128, 128
      %29 = vsyncadd [#allocation6], %s28
      %s31 = sshll.u32 [#allocation5], 4
      %s32 = int_to_ptr.vmem [resolvable:$true] %s31
      %34 = dma.hbm_to_vmem [thread:$0]  %s1, 128, %s32, [#allocation6]
    $region9: #{tpu_custom_call.1} parent=1 // pred_fallthru
      _
    // Predicated region
    $region10: #{tpu_custom_call.1} parent=1 // pred_check
      _
    $region11: #{tpu_custom_call.1} parent=1 // pred_check_branch
      %36 = sbr.rel (0) target = $region13
    $region12: #{tpu_custom_call.1} parent=1 // pred_region
      %s38 = ssub.s32 1024, 1024
      %39 = vsyncadd [#allocation6], %s38
      %s40 = sshll.u32 [#allocation7], 4
      %s41 = int_to_ptr.vmem [resolvable:$true] %s40
      %46 = dma.hbm_to_vmem [thread:$0]  %s2, 1024, %s41, [#allocation6], 128, 128, 8
    $region13: #{tpu_custom_call.1} parent=1 // pred_fallthru
      _
    // Predicated region
    $region14: #{tpu_custom_call.1} parent=1 // pred_check
      _
    $region15: #{tpu_custom_call.1} parent=1 // pred_check_branch
      %48 = sbr.rel (0) target = $region17
    $region16: #{tpu_custom_call.1} parent=1 // pred_region
      _
    $region17: #{tpu_custom_call.1} parent=1 // pred_fallthru
      _
    // Predicated region
    $region18: #{tpu_custom_call.1} parent=1 // pred_check
      _
    $region19: #{tpu_custom_call.1} parent=1 // pred_check_branch
      %50 = sbr.rel (0) target = $region21
    $region20: #{tpu_custom_call.1} parent=1 // pred_region
      %51 = dma.done [#allocation3], 128
    $region21: #{tpu_custom_call.1} parent=1 // pred_fallthru
      _
    // Predicated region
    $region22: #{tpu_custom_call.1} parent=1 // pred_check
      _
    $region23: #{tpu_custom_call.1} parent=1 // pred_check_branch
      %53 = sbr.rel (0) target = $region25
    $region24: #{tpu_custom_call.1} parent=1 // pred_region
      %54 = dma.done [#allocation6], 128
    $region25: #{tpu_custom_call.1} parent=1 // pred_fallthru
      _
    // Predicated region
    $region26: #{tpu_custom_call.1} parent=1 // pred_check
      _
    $region27: #{tpu_custom_call.1} parent=1 // pred_check_branch
      %56 = sbr.rel (0) target = $region29
    $region28: #{tpu_custom_call.1} parent=1 // pred_region
      %57 = dma.done [#allocation6], 1024
    $region29: #{tpu_custom_call.1} parent=1 // pred_fallthru
      _
    %v58 = vld [vmem:[#allocation2] sm:$0xff]
    %v59 = vld [vmem:[#allocation7] sm:$0xff]
    %v60 = vld [vmem:[#allocation7 + $0x8] sm:$0xff]
    %v61 = vld [vmem:[#allocation7 + $0x10] sm:$0xff]
    %v62 = vld [vmem:[#allocation7 + $0x18] sm:$0xff]
    %v63 = vld [vmem:[#allocation7 + $0x20] sm:$0xff]
    %v64 = vld [vmem:[#allocation7 + $0x28] sm:$0xff]
    %v65 = vld [vmem:[#allocation7 + $0x30] sm:$0xff]
    %v66 = vld [vmem:[#allocation7 + $0x38] sm:$0xff]
    %v67 = vld [vmem:[%s3] sm:$0x1]
    %v69 = vlaneseq
    %v70 = vshrl.u32 %v69, 7
    %v71 = vsub.s32 0, %v70
    %v72 = vrot.slane %v67, %v71
    %vm74 = vcmask 523264
    %v76 = vsel %vm74, %v58, 0
    %78 = vmatprep.subr.mxu0 0.0
    %79 = vmatpush1.msra.mxu0 %v59
    %80 = vmatprep.subr.mxu0 0.0
    %81 = vmatpush1.msra.mxu0 %v60
    %82 = vmatprep.subr.mxu0 0.0
    %83 = vmatpush1.msra.mxu0 %v61
    %84 = vmatprep.subr.mxu0 0.0
    %85 = vmatpush1.msra.mxu0 %v62
    %86 = vmatprep.subr.mxu0 0.0
    %87 = vmatpush1.msra.mxu0 %v63
    %88 = vmatprep.subr.mxu0 0.0
    %89 = vmatpush1.msra.mxu0 %v64
    %90 = vmatprep.subr.mxu0 0.0
    %91 = vmatpush1.msra.mxu0 %v65
    %92 = vmatprep.subr.mxu0 0.0
    %93 = vmatpush1.msra.mxu0 %v66
    %94 = vmatprep.subr.mxu0 0.0
    %95 = vmatpush1.msra.mxu0 0.0
    %96 = vmatprep.subr.mxu0 0.0
    %97 = vmatpush1.msra.mxu0 0.0
    %98 = vmatprep.subr.mxu0 0.0
    %99 = vmatpush1.msra.mxu0 0.0
    %100 = vmatprep.subr.mxu0 0.0
    %101 = vmatpush1.msra.mxu0 0.0
    %102 = vmatprep.subr.mxu0 0.0
    %103 = vmatpush1.msra.mxu0 0.0
    %104 = vmatprep.subr.mxu0 0.0
    %105 = vmatpush1.msra.mxu0 0.0
    %106 = vmatprep.subr.mxu0 0.0
    %107 = vmatpush1.msra.mxu0 0.0
    %108 = vmatprep.subr.mxu0 0.0
    %109 = vmatpush1.msra.mxu0 0.0
    %110 = vmatprep.subr.mxu0 0.0
    %111 = vmatpush1.msra.mxu0 0.0
    %112 = vmatprep.subr.mxu0 0.0
    %113 = vmatpush1.msra.mxu0 0.0
    %114 = vmatprep.subr.mxu0 0.0
    %115 = vmatpush1.msra.mxu0 0.0
    %116 = vmatprep.subr.mxu0 0.0
    %117 = vmatpush1.msra.mxu0 0.0
    %118 = vmatprep.subr.mxu0 0.0
    %119 = vmatpush1.msra.mxu0 0.0
    %120 = vmatprep.subr.mxu0 0.0
    %121 = vmatpush1.msra.mxu0 0.0
    %122 = vmatprep.subr.mxu0 0.0
    %123 = vmatpush1.msra.mxu0 0.0
    %124 = vmatprep.subr.mxu0 0.0
    %125 = vmatpush1.msra.mxu0 0.0
    %126 = vmatprep.subr.mxu0 0.0
    %127 = vmatpush1.msra.mxu0 0.0
    %128 = vmatprep.subr.mxu0 0.0
    %129 = vmatpush1.msra.mxu0 0.0
    %130 = vmatprep.subr.mxu0 0.0
    %131 = vmatpush1.msra.mxu0 0.0
    %132 = vmatprep.subr.mxu0 0.0
    %133 = vmatpush1.msra.mxu0 0.0
    %134 = vmatprep.subr.mxu0 0.0
    %135 = vmatpush1.msra.mxu0 0.0
    %136 = vmatprep.subr.mxu0 0.0
    %137 = vmatpush1.msra.mxu0 0.0
    %138 = vmatprep.subr.mxu0 0.0
    %139 = vmatpush1.msra.mxu0 0.0
    %140 = vmatprep.subr.mxu0 0.0
    %141 = vmatpush1.msra.mxu0 0.0
    %142 = vmatprep.mubr.f32.mxu0 0.0
    %143 = vmatmul.mubr.f32.gmra.mrb[0].mxu0 %v76
    %v144 = vpop.f32.mrb[0].mxu0
    %v145 = vadd.f32 %v72, %v144
    %v146 = vpop.f32.mrb[0].mxu0
    %147 = vdwg.mxu0
    %v148 = vlaneseq
    %v149 = vand.u32 %v148, 127
    %vm150 = vcmp.lt.s32.totalorder %v149, 96
    %v151 = vxor.u32 %v145, 2147483648
    %v152 = vmul.f32 %v151, 1.442695
    %v153 = vpow.pop %v152
    %v154 = vadd.f32 %v153, 1.0
    %v155 = vrcp.pop %v154
    %v156 = vmul.f32 1.0, %v155
    %v157 = vtanh.pop %v145
    %v158 = vsel %vm150, %v156, %v157
    %159 = vst [vmem:[#allocation8] sm:$0xff] %v158
    %v160 = vld [vmem:[#allocation5] sm:$0xff]
    %v161 = vmul.f32 %v160, %v158
    %163 = vrot.lane.b32.xlu0 %v158, 64
    %v164 = vpop.permute.xlu0 %163
    %v166 = vmul.f32 %v158, %v164
    %168 = vrot.lane.b32.xlu0 %v166, 96
    %v169 = vpop.permute.xlu0 %168
    %v171 = vadd.f32 %v161, %v169
    %v172 = vtanh.pop %v171
    %174 = vrot.lane.b32.xlu0 %v172, 64
    %v175 = vpop.permute.xlu0 %174
    %v177 = vmul.f32 %v158, %v175
    %179 = vrot.lane.b32.xlu0 %v177, 64
    %v180 = vpop.permute.xlu0 %179
    %183 = vrot.lane.b32.xlu0 %v171, 32
    %v184 = vpop.permute.xlu0 %183
    %vm186 = vcmask 261120
    %v187 = vsel %vm186, %v180, %v184
    %188 = vst.msk [vmem:[#allocation9] sm:$0xff] %vm74, %v187
    // Predicated region
    $region30: #{tpu_custom_call.1} parent=1 // pred_check
      _
    $region31: #{tpu_custom_call.1} parent=1 // pred_check_branch
      %190 = sbr.rel (0) target = $region33
    $region32: #{tpu_custom_call.1} parent=1 // pred_region
      %s192 = ssub.s32 128, 128
      %193 = vsyncadd [#allocation4], %s192
      %s195 = sshll.u32 [#allocation8], 4
      %s196 = int_to_ptr.vmem [resolvable:$true] %s195
      %198 = dma.vmem_to_hbm [thread:$0]  %s196, 128, %s4, [#allocation4]
    $region33: #{tpu_custom_call.1} parent=1 // pred_fallthru
      _
    // Predicated region
    $region34: #{tpu_custom_call.1} parent=1 // pred_check
      _
    $region35: #{tpu_custom_call.1} parent=1 // pred_check_branch
      %200 = sbr.rel (0) target = $region37
    $region36: #{tpu_custom_call.1} parent=1 // pred_region
      %s202 = ssub.s32 128, 128
      %203 = vsyncadd [#allocation10], %s202
      %s205 = sshll.u32 [#allocation9], 4
      %s206 = int_to_ptr.vmem [resolvable:$true] %s205
      %208 = dma.vmem_to_hbm [thread:$0]  %s206, 128, %s5, [#allocation10]
    $region37: #{tpu_custom_call.1} parent=1 // pred_fallthru
      _
    // Predicated region
    $region38: #{tpu_custom_call.1} parent=1 // pred_check
      _
    $region39: #{tpu_custom_call.1} parent=1 // pred_check_branch
      %210 = sbr.rel (0) target = $region41
    $region40: #{tpu_custom_call.1} parent=1 // pred_region
      %211 = dma.done [#allocation4], 128
    $region41: #{tpu_custom_call.1} parent=1 // pred_fallthru
      _
    // Predicated region
    $region42: #{tpu_custom_call.1} parent=1 // pred_check
      _
    $region43: #{tpu_custom_call.1} parent=1 // pred_check_branch
      %213 = sbr.rel (0) target = $region45
    $region44: #{tpu_custom_call.1} parent=1 // pred_region
      %214 = dma.done [#allocation10], 128
    $region45: #{tpu_custom_call.1} parent=1 // pred_fallthru
      _
    %215 = vsyncpa [#allocation3], 1
    %216 = vsyncpa [#allocation6], 1
    %217 = vsyncpa [#allocation4], 1
    %218 = vsyncpa [#allocation10], 1

</llo_original>
